<compile_context>
chip_gen: v5e
topology: v5e:2x2
jax: 0.10.0
libtpu: 0.0.40
codegen_flags: <defaults>
</compile_context>

<pallas_src>
import functools

import numpy as np
import jax
import jax.numpy as jnp
from jax.experimental import pallas as pl
from jax.experimental.pallas import tpu as pltpu


# ----------------------------------------------------------------------------
# Fused kernel.  Grid = (num_crops // crops_per_step,):
#   step 0        : teacher phase (softmaxes -> scratch, center EMA) + students
#   steps 1..end  : remaining student crops, streamed & reduced to scalars
# The single "arbitrary" grid axis is required: scratch (t_soft, loss
# accumulator) carries state across steps.
# ----------------------------------------------------------------------------
def _dino_loss_kernel(inv_tt_ref, student_ref, teacher_ref, center_ref,
                      loss_ref, new_center_ref,
                      t0_ref, t1_ref, loss_acc_ref, *,
                      crops_per_step, batch, student_temp, n_loss_terms,
                      center_momentum):
    step = pl.program_id(0)
    B = batch

    # --- teacher-first phase: runs once, in grid step 0 --------------------
    @pl.when(step == 0)
    def _teacher_phase():
        t_raw = teacher_ref[...].astype(jnp.float32)              # (2B, D)
        t = (t_raw - center_ref[...]) * inv_tt_ref[0]
        t = t - jnp.max(t, axis=-1, keepdims=True)
        et = jnp.exp(t)
        # Exact reciprocal (only 2B values): the streaming loss reduction
        # below relies on sum_d(t_soft) == 1, so an approx vrcp would leak
        # its ~1e-4 relative error into the logZ coefficient.
        inv_z = pl.reciprocal(jnp.sum(et, axis=-1, keepdims=True))
        t_soft = et * inv_z                                        # (2B, D)
        t0_ref[...] = t_soft[:B, :]
        t1_ref[...] = t_soft[B:, :]

        # Center EMA on RAW teacher logits.  axis-0 reduce done as a matmul
        # on the otherwise idle MXU instead of an XLU sublane reduce.
        ones_row = jnp.ones((1, 2 * B), dtype=jnp.float32)
        csum = jnp.dot(ones_row, t_raw,
                       precision=jax.lax.Precision.HIGHEST,
                       preferred_element_type=jnp.float32)         # (1, D)
        new_center_ref[...] = (
            center_ref[...] * np.float32(center_momentum)
            + csum * np.float32((1.0 - center_momentum) / (2.0 * B)))

        loss_acc_ref[0, 0] = jnp.float32(0.0)

    # --- student streaming phase: every grid step --------------------------
    inv_st = np.float32(1.0 / student_temp)
    contrib = jnp.float32(0.0)
    for local in range(crops_per_step):                 # static unroll
        crop = step * crops_per_step + local
        s = (student_ref[local * B:(local + 1) * B, :].astype(jnp.float32)
             * inv_st)                                   # (B, D)
        s = s - jnp.max(s, axis=-1, keepdims=True)
        logz = jnp.log(jnp.sum(jnp.exp(s), axis=-1, keepdims=True))   # (B, 1)
        sum_logz = jnp.sum(logz)
        # Per pair (teacher t, student crop):
        #   B * loss = sum_rows(logZ_s) - sum_rows(<t_soft, s_shift>)
        c0 = sum_logz - jnp.sum(t0_ref[...] * s)
        c1 = sum_logz - jnp.sum(t1_ref[...] * s)
        # crop 0 pairs only with teacher 1, crop 1 only with teacher 0,
        # every other crop pairs with both teachers.
        contrib = contrib + jnp.where(
            crop == 0, c1, jnp.where(crop == 1, c0, c0 + c1))
    loss_acc_ref[0, 0] = loss_acc_ref[0, 0] + contrib

    # --- finalize on the last step ------------------------------------------
    @pl.when(step == pl.num_programs(0) - 1)
    def _finalize():
        loss_ref[0, 0] = loss_acc_ref[0, 0] * np.float32(
            1.0 / (n_loss_terms * batch))


def dino_loss_pallas(student_output, teacher_output, center,
                     teacher_temp_value, *, num_crops, student_temp=0.1,
                     center_momentum=0.9,
                     student_block_budget_bytes=8 << 20):
    """Returns (loss_scalar, new_center) — mirrors DINOLoss.forward +
    update_center in one fused pallas_call."""
    n_student_rows, D = student_output.shape
    n_teacher_rows, Dt = teacher_output.shape
    assert D == Dt
    assert n_teacher_rows % 2 == 0
    B = n_teacher_rows // 2
    assert n_student_rows == num_crops * B
    assert num_crops >= 2
    # (B, D) tiles where B is not the full leading dim must be sublane
    # multiples (8 for f32, 16 for bf16 inputs).
    assert B % 8 == 0, "samples-per-crop must be a multiple of 8"
    n_loss_terms = 2 * num_crops - 2

    # Fold as many crops per grid step as fit the budget; collapses the grid
    # to (1,) at small/test shapes (amortizes ~0.35us per-step overhead).
    itemsize_s = student_output.dtype.itemsize
    crops_per_step = 1
    for c in range(1, num_crops + 1):
        if num_crops % c == 0 and c * B * D * itemsize_s <= student_block_budget_bytes:
            crops_per_step = c
    num_steps = num_crops // crops_per_step

    kernel = functools.partial(
        _dino_loss_kernel,
        crops_per_step=crops_per_step,
        batch=B,
        student_temp=student_temp,
        n_loss_terms=n_loss_terms,
        center_momentum=center_momentum,
    )

    grid_spec = pltpu.PrefetchScalarGridSpec(
        num_scalar_prefetch=1,
        grid=(num_steps,),
        in_specs=[
            # crops_per_step student crops per step
            pl.BlockSpec((crops_per_step * B, D), lambda i, inv: (i, 0)),
            # both teacher crops, resident (constant index map -> single DMA)
            # TODO(synk): drop to pl.ANY + manual DMA on v7x if VMEM-tight.
            pl.BlockSpec((2 * B, D), lambda i, inv: (0, 0)),
            pl.BlockSpec((1, D), lambda i, inv: (0, 0)),          # center
        ],
        out_specs=[
            pl.BlockSpec((1, 1), lambda i, inv: (0, 0),
                         memory_space=pltpu.MemorySpace.SMEM),    # loss
            pl.BlockSpec((1, D), lambda i, inv: (0, 0)),          # new center
        ],
        scratch_shapes=[
            pltpu.VMEM((B, D), jnp.float32),   # t_soft, teacher crop 0
            pltpu.VMEM((B, D), jnp.float32),   # t_soft, teacher crop 1
            pltpu.SMEM((1, 1), jnp.float32),   # scalar loss accumulator
        ],
    )

    # Explicit VMEM budget (scoped default is 16 MiB on v5e / 32 MiB v6e+).
    itemsize_t = teacher_output.dtype.itemsize
    vmem_need = (2 * crops_per_step * B * D * itemsize_s   # student (dbl buf)
                 + 2 * 2 * B * D * itemsize_t              # teacher (dbl buf)
                 + 2 * D * center.dtype.itemsize           # center
                 + 2 * D * 4                               # new_center out
                 + 2 * B * D * 4)                          # t_soft scratches
    vmem_limit = int(min(max(2 * vmem_need, 32 << 20), 128 << 20))

    inv_temp = jnp.asarray([1.0 / teacher_temp_value], dtype=jnp.float32)
    loss, new_center = pl.pallas_call(
        kernel,
        grid_spec=grid_spec,
        out_shape=(jax.ShapeDtypeStruct((1, 1), jnp.float32),
                   jax.ShapeDtypeStruct((1, D), jnp.float32)),
        compiler_params=pltpu.CompilerParams(
            dimension_semantics=("arbitrary",),
            vmem_limit_bytes=vmem_limit),
    )(inv_temp, student_output, teacher_output, center)
    return loss[0, 0], new_center


# ----------------------------------------------------------------------------
# Pure-JAX reference (mirrors the PyTorch forward) for a correctness check.
# ----------------------------------------------------------------------------
def dino_loss_ref(student_output, teacher_output, center, temp, num_crops,
                  student_temp=0.1):
    student_chunks = jnp.split(student_output, num_crops, axis=0)
    teacher_chunks = jnp.split(teacher_output, 2, axis=0)
    s_ls = [jax.nn.log_softmax(s / student_temp, axis=-1)
            for s in student_chunks]
    t_sm = [jax.nn.softmax((t - center) / temp, axis=-1)
            for t in teacher_chunks]
    total, n = 0.0, 0
    for ti, t in enumerate(t_sm):
        for si, s in enumerate(s_ls):
            if ti == si:
                continue
            total = total + jnp.mean(jnp.sum(-t * s, axis=-1))
            n += 1
    return total / n


if __name__ == "__main__":
    # DINOLoss(out_dim, num_crops, warmup_teacher_temp, teacher_temp,
    #          warmup_teacher_temp_epochs, num_epochs)
    out_dim = 128
    num_crops = 4
    n_samples = 8            # samples per crop
    warmup_teacher_temp = 0.04
    teacher_temp = 0.07
    warmup_teacher_temp_epochs = 5
    num_epochs = 20
    student_temp = 0.1
    center_momentum = 0.9
    epoch = 3

    teacher_temp_schedule = np.concatenate((
        np.linspace(warmup_teacher_temp, teacher_temp,
                    warmup_teacher_temp_epochs),
        np.ones(num_epochs - warmup_teacher_temp_epochs) * teacher_temp))
    temp_value = float(teacher_temp_schedule[epoch])

    key = jax.random.PRNGKey(0)
    k1, k2 = jax.random.split(key)
    student_output = jax.random.normal(
        k1, (num_crops * n_samples, out_dim), dtype=jnp.float32)
    teacher_output = jax.random.normal(
        k2, (2 * n_samples, out_dim), dtype=jnp.float32)
    center = jnp.zeros((1, out_dim), dtype=jnp.float32)   # registered buffer

    loss, new_center = dino_loss_pallas(
        student_output, teacher_output, center, temp_value,
        num_crops=num_crops, student_temp=student_temp,
        center_momentum=center_momentum)
    jax.block_until_ready((loss, new_center))

    # correctness vs pure-JAX reference
    loss_ref = dino_loss_ref(student_output, teacher_output, center,
                             temp_value, num_crops, student_temp)
    center_ref = (center * center_momentum
                  + (jnp.sum(teacher_output, axis=0, keepdims=True)
                     / teacher_output.shape[0]) * (1 - center_momentum))
    np.testing.assert_allclose(np.asarray(loss), np.asarray(loss_ref),
                               rtol=1e-5, atol=1e-5)
    np.testing.assert_allclose(np.asarray(new_center), np.asarray(center_ref),
                               rtol=1e-5, atol=1e-6)

    print("KERNEL_OK")
</pallas_src>

<mosaic_0001>
module attributes {stable_mosaic.version = 11 : i64} {
  func.func @_dino_loss_kernel(%arg0: i32, %arg1: memref<1xf32, #tpu.memory_space<smem>>, %arg2: memref<32x128xf32, #tpu.memory_space<vmem>>, %arg3: memref<16x128xf32, #tpu.memory_space<vmem>>, %arg4: memref<1x128xf32, #tpu.memory_space<vmem>>, %arg5: memref<1x1xf32, #tpu.memory_space<smem>>, %arg6: memref<1x128xf32, #tpu.memory_space<vmem>>, %arg7: memref<8x128xf32, #tpu.memory_space<vmem>>, %arg8: memref<8x128xf32, #tpu.memory_space<vmem>>, %arg9: memref<1x1xf32, #tpu.memory_space<smem>>) attributes {dimension_semantics = [#tpu.dimension_semantics<arbitrary>], iteration_bounds = array<i64: 1>, scalar_prefetch = 1 : i64, scratch_operands = 3 : i64, tpu.core_type = #tpu.core_type<tc>, window_params = [{transform_indices = @transform_0, window_bounds = array<i64: 32, 128>}, {pipeline_mode = #tpu.pipeline_mode<synchronous>, transform_indices = @transform_1, window_bounds = array<i64: 16, 128>}, {pipeline_mode = #tpu.pipeline_mode<synchronous>, transform_indices = @transform_2, window_bounds = array<i64: 1, 128>}, {transform_indices = @transform_3, window_bounds = array<i64: 1, 1>}, {pipeline_mode = #tpu.pipeline_mode<synchronous>, transform_indices = @transform_4, window_bounds = array<i64: 1, 128>}]} {
    %c0_i32 = arith.constant 0 : i32
    %0 = arith.cmpi eq, %arg0, %c0_i32 : i32
    %1 = arith.extui %0 : i1 to i32
    %c0_i32_0 = arith.constant 0 : i32
    %2 = arith.cmpi ne, %1, %c0_i32_0 : i32
    scf.if %2 {
      %c0_63 = arith.constant 0 : index
      %c0_64 = arith.constant 0 : index
      %157 = vector.load %arg3[%c0_63, %c0_64] : memref<16x128xf32, #tpu.memory_space<vmem>>, vector<16x128xf32>
      %c0_65 = arith.constant 0 : index
      %c0_66 = arith.constant 0 : index
      %158 = vector.load %arg4[%c0_65, %c0_66] : memref<1x128xf32, #tpu.memory_space<vmem>>, vector<1x128xf32>
      %159 = vector.broadcast %158 : vector<1x128xf32> to vector<16x128xf32>
      %160 = arith.subf %157, %159 : vector<16x128xf32>
      %c0_67 = arith.constant 0 : index
      %161 = memref.load %arg1[%c0_67] : memref<1xf32, #tpu.memory_space<smem>>
      %162 = vector.broadcast %161 : f32 to vector<16x128xf32>
      %163 = arith.mulf %160, %162 : vector<16x128xf32>
      %cst_68 = arith.constant dense<0xFF800000> : vector<16xf32>
      %164 = vector.multi_reduction <maximumf>, %163, %cst_68 [1] : vector<16x128xf32> to vector<16xf32>
      %165 = vector.shape_cast %164 : vector<16xf32> to vector<16x1xf32>
      %166 = vector.broadcast %165 : vector<16x1xf32> to vector<16x128xf32>
      %167 = arith.subf %163, %166 : vector<16x128xf32>
      %168 = math.exp %167 : vector<16x128xf32>
      %cst_69 = arith.constant dense<0.000000e+00> : vector<16xf32>
      %169 = vector.multi_reduction <add>, %168, %cst_69 [1] : vector<16x128xf32> to vector<16xf32>
      %170 = vector.shape_cast %169 : vector<16xf32> to vector<16x1xf32>
      %171 = tpu.reciprocal %170 : vector<16x1xf32> -> vector<16x1xf32>
      %172 = vector.broadcast %171 : vector<16x1xf32> to vector<16x128xf32>
      %173 = arith.mulf %168, %172 : vector<16x128xf32>
      %174 = vector.extract_strided_slice %173 {offsets = [0, 0], sizes = [8, 128], strides = [1, 1]} : vector<16x128xf32> to vector<8x128xf32>
      %c0_70 = arith.constant 0 : index
      %c0_71 = arith.constant 0 : index
      %175 = vector.load %arg7[%c0_70, %c0_71] : memref<8x128xf32, #tpu.memory_space<vmem>>, vector<8x128xf32>
      tpu.vector_store %arg7[%c0_70, %c0_71], %174 {strides = array<i32>} : memref<8x128xf32, #tpu.memory_space<vmem>>, vector<8x128xf32>,
      %176 = vector.extract_strided_slice %173 {offsets = [8, 0], sizes = [8, 128], strides = [1, 1]} : vector<16x128xf32> to vector<8x128xf32>
      %c0_72 = arith.constant 0 : index
      %c0_73 = arith.constant 0 : index
      %177 = vector.load %arg8[%c0_72, %c0_73] : memref<8x128xf32, #tpu.memory_space<vmem>>, vector<8x128xf32>
      tpu.vector_store %arg8[%c0_72, %c0_73], %176 {strides = array<i32>} : memref<8x128xf32, #tpu.memory_space<vmem>>, vector<8x128xf32>,
      %cst_74 = arith.constant 1.000000e+00 : f32
      %178 = vector.broadcast %cst_74 : f32 to vector<1x16xf32>
      %cst_75 = arith.constant dense<0.000000e+00> : vector<1x128xf32>
      %179 = tpu.matmul %178, %157, %cst_75 {dimension_numbers = #tpu.dot_dimension_numbers<[1], [0], [0], [1], [0, 0, 1, 1], [], []>, precision = #tpu.contract_precision<fp32>} : vector<1x16xf32>, vector<16x128xf32>, vector<1x128xf32> -> vector<1x128xf32>
      %c0_76 = arith.constant 0 : index
      %c0_77 = arith.constant 0 : index
      %180 = vector.load %arg4[%c0_76, %c0_77] : memref<1x128xf32, #tpu.memory_space<vmem>>, vector<1x128xf32>
      %cst_78 = arith.constant 0.899999976 : f32
      %181 = vector.broadcast %cst_78 : f32 to vector<1x128xf32>
      %182 = arith.mulf %180, %181 : vector<1x128xf32>
      %cst_79 = arith.constant 6.250000e-03 : f32
      %183 = vector.broadcast %cst_79 : f32 to vector<1x128xf32>
      %184 = arith.mulf %179, %183 : vector<1x128xf32>
      %185 = arith.addf %182, %184 : vector<1x128xf32>
      %c0_80 = arith.constant 0 : index
      %c0_81 = arith.constant 0 : index
      %186 = vector.load %arg6[%c0_80, %c0_81] : memref<1x128xf32, #tpu.memory_space<vmem>>, vector<1x128xf32>
      tpu.vector_store %arg6[%c0_80, %c0_81], %185 {strides = array<i32>} : memref<1x128xf32, #tpu.memory_space<vmem>>, vector<1x128xf32>,
      %cst_82 = arith.constant 0.000000e+00 : f32
      %c0_83 = arith.constant 0 : index
      %c0_84 = arith.constant 0 : index
      %187 = memref.load %arg9[%c0_83, %c0_84] : memref<1x1xf32, #tpu.memory_space<smem>>
      memref.store %cst_82, %arg9[%c0_83, %c0_84] : memref<1x1xf32, #tpu.memory_space<smem>>
    } else {
    }
    %c4_i32 = arith.constant 4 : i32
    %3 = arith.muli %arg0, %c4_i32 : i32
    %c0_i32_1 = arith.constant 0 : i32
    %4 = arith.addi %3, %c0_i32_1 : i32
    %c0 = arith.constant 0 : index
    %c0_2 = arith.constant 0 : index
    %5 = vector.load %arg2[%c0, %c0_2] : memref<32x128xf32, #tpu.memory_space<vmem>>, vector<8x128xf32>
    %cst = arith.constant 1.000000e+01 : f32
    %6 = vector.broadcast %cst : f32 to vector<8x128xf32>
    %7 = arith.mulf %5, %6 : vector<8x128xf32>
    %cst_3 = arith.constant dense<0xFF800000> : vector<8xf32>
    %8 = vector.multi_reduction <maximumf>, %7, %cst_3 [1] : vector<8x128xf32> to vector<8xf32>
    %9 = vector.shape_cast %8 : vector<8xf32> to vector<8x1xf32>
    %10 = vector.broadcast %9 : vector<8x1xf32> to vector<8x128xf32>
    %11 = arith.subf %7, %10 : vector<8x128xf32>
    %12 = math.exp %11 : vector<8x128xf32>
    %cst_4 = arith.constant dense<0.000000e+00> : vector<8xf32>
    %13 = vector.multi_reduction <add>, %12, %cst_4 [1] : vector<8x128xf32> to vector<8xf32>
    %14 = vector.shape_cast %13 : vector<8xf32> to vector<8x1xf32>
    %15 = math.log %14 : vector<8x1xf32>
    %16 = vector.shape_cast %15 : vector<8x1xf32> to vector<1x8x1xf32>
    %cst_5 = arith.constant dense<0.000000e+00> : vector<1xf32>
    %17 = vector.multi_reduction <add>, %16, %cst_5 [1, 2] : vector<1x8x1xf32> to vector<1xf32>
    %18 = vector.shape_cast %17 : vector<1xf32> to vector<1x1x1xf32>
    %19 = vector.extract %18[0, 0, 0] : f32 from vector<1x1x1xf32>
    %c0_6 = arith.constant 0 : index
    %c0_7 = arith.constant 0 : index
    %20 = vector.load %arg7[%c0_6, %c0_7] : memref<8x128xf32, #tpu.memory_space<vmem>>, vector<8x128xf32>
    %21 = arith.mulf %20, %11 : vector<8x128xf32>
    %22 = vector.shape_cast %21 : vector<8x128xf32> to vector<1x8x128xf32>
    %cst_8 = arith.constant dense<0.000000e+00> : vector<1xf32>
    %23 = vector.multi_reduction <add>, %22, %cst_8 [1, 2] : vector<1x8x128xf32> to vector<1xf32>
    %24 = vector.shape_cast %23 : vector<1xf32> to vector<1x1x1xf32>
    %25 = vector.extract %24[0, 0, 0] : f32 from vector<1x1x1xf32>
    %26 = arith.subf %19, %25 : f32
    %c0_9 = arith.constant 0 : index
    %c0_10 = arith.constant 0 : index
    %27 = vector.load %arg8[%c0_9, %c0_10] : memref<8x128xf32, #tpu.memory_space<vmem>>, vector<8x128xf32>
    %28 = arith.mulf %27, %11 : vector<8x128xf32>
    %29 = vector.shape_cast %28 : vector<8x128xf32> to vector<1x8x128xf32>
    %cst_11 = arith.constant dense<0.000000e+00> : vector<1xf32>
    %30 = vector.multi_reduction <add>, %29, %cst_11 [1, 2] : vector<1x8x128xf32> to vector<1xf32>
    %31 = vector.shape_cast %30 : vector<1xf32> to vector<1x1x1xf32>
    %32 = vector.extract %31[0, 0, 0] : f32 from vector<1x1x1xf32>
    %33 = arith.subf %19, %32 : f32
    %c0_i32_12 = arith.constant 0 : i32
    %34 = arith.cmpi eq, %4, %c0_i32_12 : i32
    %c1_i32 = arith.constant 1 : i32
    %35 = arith.cmpi eq, %4, %c1_i32 : i32
    %36 = arith.addf %26, %33 : f32
    %37 = arith.select %35, %26, %36 : f32
    %38 = arith.select %34, %33, %37 : f32
    %cst_13 = arith.constant 0.000000e+00 : f32
    %39 = arith.addf %cst_13, %38 : f32
    %c4_i32_14 = arith.constant 4 : i32
    %40 = arith.muli %arg0, %c4_i32_14 : i32
    %c1_i32_15 = arith.constant 1 : i32
    %41 = arith.addi %40, %c1_i32_15 : i32
    %c8 = arith.constant 8 : index
    %c0_16 = arith.constant 0 : index
    %42 = vector.load %arg2[%c8, %c0_16] : memref<32x128xf32, #tpu.memory_space<vmem>>, vector<8x128xf32>
    %cst_17 = arith.constant 1.000000e+01 : f32
    %43 = vector.broadcast %cst_17 : f32 to vector<8x128xf32>
    %44 = arith.mulf %42, %43 : vector<8x128xf32>
    %cst_18 = arith.constant dense<0xFF800000> : vector<8xf32>
    %45 = vector.multi_reduction <maximumf>, %44, %cst_18 [1] : vector<8x128xf32> to vector<8xf32>
    %46 = vector.shape_cast %45 : vector<8xf32> to vector<8x1xf32>
    %47 = vector.broadcast %46 : vector<8x1xf32> to vector<8x128xf32>
    %48 = arith.subf %44, %47 : vector<8x128xf32>
    %49 = math.exp %48 : vector<8x128xf32>
    %cst_19 = arith.constant dense<0.000000e+00> : vector<8xf32>
    %50 = vector.multi_reduction <add>, %49, %cst_19 [1] : vector<8x128xf32> to vector<8xf32>
    %51 = vector.shape_cast %50 : vector<8xf32> to vector<8x1xf32>
    %52 = math.log %51 : vector<8x1xf32>
    %53 = vector.shape_cast %52 : vector<8x1xf32> to vector<1x8x1xf32>
    %cst_20 = arith.constant dense<0.000000e+00> : vector<1xf32>
    %54 = vector.multi_reduction <add>, %53, %cst_20 [1, 2] : vector<1x8x1xf32> to vector<1xf32>
    %55 = vector.shape_cast %54 : vector<1xf32> to vector<1x1x1xf32>
    %56 = vector.extract %55[0, 0, 0] : f32 from vector<1x1x1xf32>
    %c0_21 = arith.constant 0 : index
    %c0_22 = arith.constant 0 : index
    %57 = vector.load %arg7[%c0_21, %c0_22] : memref<8x128xf32, #tpu.memory_space<vmem>>, vector<8x128xf32>
    %58 = arith.mulf %57, %48 : vector<8x128xf32>
    %59 = vector.shape_cast %58 : vector<8x128xf32> to vector<1x8x128xf32>
    %cst_23 = arith.constant dense<0.000000e+00> : vector<1xf32>
    %60 = vector.multi_reduction <add>, %59, %cst_23 [1, 2] : vector<1x8x128xf32> to vector<1xf32>
    %61 = vector.shape_cast %60 : vector<1xf32> to vector<1x1x1xf32>
    %62 = vector.extract %61[0, 0, 0] : f32 from vector<1x1x1xf32>
    %63 = arith.subf %56, %62 : f32
    %c0_24 = arith.constant 0 : index
    %c0_25 = arith.constant 0 : index
    %64 = vector.load %arg8[%c0_24, %c0_25] : memref<8x128xf32, #tpu.memory_space<vmem>>, vector<8x128xf32>
    %65 = arith.mulf %64, %48 : vector<8x128xf32>
    %66 = vector.shape_cast %65 : vector<8x128xf32> to vector<1x8x128xf32>
    %cst_26 = arith.constant dense<0.000000e+00> : vector<1xf32>
    %67 = vector.multi_reduction <add>, %66, %cst_26 [1, 2] : vector<1x8x128xf32> to vector<1xf32>
    %68 = vector.shape_cast %67 : vector<1xf32> to vector<1x1x1xf32>
    %69 = vector.extract %68[0, 0, 0] : f32 from vector<1x1x1xf32>
    %70 = arith.subf %56, %69 : f32
    %c0_i32_27 = arith.constant 0 : i32
    %71 = arith.cmpi eq, %41, %c0_i32_27 : i32
    %c1_i32_28 = arith.constant 1 : i32
    %72 = arith.cmpi eq, %41, %c1_i32_28 : i32
    %73 = arith.addf %63, %70 : f32
    %74 = arith.select %72, %63, %73 : f32
    %75 = arith.select %71, %70, %74 : f32
    %76 = arith.addf %39, %75 : f32
    %c4_i32_29 = arith.constant 4 : i32
    %77 = arith.muli %arg0, %c4_i32_29 : i32
    %c2_i32 = arith.constant 2 : i32
    %78 = arith.addi %77, %c2_i32 : i32
    %c16 = arith.constant 16 : index
    %c0_30 = arith.constant 0 : index
    %79 = vector.load %arg2[%c16, %c0_30] : memref<32x128xf32, #tpu.memory_space<vmem>>, vector<8x128xf32>
    %cst_31 = arith.constant 1.000000e+01 : f32
    %80 = vector.broadcast %cst_31 : f32 to vector<8x128xf32>
    %81 = arith.mulf %79, %80 : vector<8x128xf32>
    %cst_32 = arith.constant dense<0xFF800000> : vector<8xf32>
    %82 = vector.multi_reduction <maximumf>, %81, %cst_32 [1] : vector<8x128xf32> to vector<8xf32>
    %83 = vector.shape_cast %82 : vector<8xf32> to vector<8x1xf32>
    %84 = vector.broadcast %83 : vector<8x1xf32> to vector<8x128xf32>
    %85 = arith.subf %81, %84 : vector<8x128xf32>
    %86 = math.exp %85 : vector<8x128xf32>
    %cst_33 = arith.constant dense<0.000000e+00> : vector<8xf32>
    %87 = vector.multi_reduction <add>, %86, %cst_33 [1] : vector<8x128xf32> to vector<8xf32>
    %88 = vector.shape_cast %87 : vector<8xf32> to vector<8x1xf32>
    %89 = math.log %88 : vector<8x1xf32>
    %90 = vector.shape_cast %89 : vector<8x1xf32> to vector<1x8x1xf32>
    %cst_34 = arith.constant dense<0.000000e+00> : vector<1xf32>
    %91 = vector.multi_reduction <add>, %90, %cst_34 [1, 2] : vector<1x8x1xf32> to vector<1xf32>
    %92 = vector.shape_cast %91 : vector<1xf32> to vector<1x1x1xf32>
    %93 = vector.extract %92[0, 0, 0] : f32 from vector<1x1x1xf32>
    %c0_35 = arith.constant 0 : index
    %c0_36 = arith.constant 0 : index
    %94 = vector.load %arg7[%c0_35, %c0_36] : memref<8x128xf32, #tpu.memory_space<vmem>>, vector<8x128xf32>
    %95 = arith.mulf %94, %85 : vector<8x128xf32>
    %96 = vector.shape_cast %95 : vector<8x128xf32> to vector<1x8x128xf32>
    %cst_37 = arith.constant dense<0.000000e+00> : vector<1xf32>
    %97 = vector.multi_reduction <add>, %96, %cst_37 [1, 2] : vector<1x8x128xf32> to vector<1xf32>
    %98 = vector.shape_cast %97 : vector<1xf32> to vector<1x1x1xf32>
    %99 = vector.extract %98[0, 0, 0] : f32 from vector<1x1x1xf32>
    %100 = arith.subf %93, %99 : f32
    %c0_38 = arith.constant 0 : index
    %c0_39 = arith.constant 0 : index
    %101 = vector.load %arg8[%c0_38, %c0_39] : memref<8x128xf32, #tpu.memory_space<vmem>>, vector<8x128xf32>
    %102 = arith.mulf %101, %85 : vector<8x128xf32>
    %103 = vector.shape_cast %102 : vector<8x128xf32> to vector<1x8x128xf32>
    %cst_40 = arith.constant dense<0.000000e+00> : vector<1xf32>
    %104 = vector.multi_reduction <add>, %103, %cst_40 [1, 2] : vector<1x8x128xf32> to vector<1xf32>
    %105 = vector.shape_cast %104 : vector<1xf32> to vector<1x1x1xf32>
    %106 = vector.extract %105[0, 0, 0] : f32 from vector<1x1x1xf32>
    %107 = arith.subf %93, %106 : f32
    %c0_i32_41 = arith.constant 0 : i32
    %108 = arith.cmpi eq, %78, %c0_i32_41 : i32
    %c1_i32_42 = arith.constant 1 : i32
    %109 = arith.cmpi eq, %78, %c1_i32_42 : i32
    %110 = arith.addf %100, %107 : f32
    %111 = arith.select %109, %100, %110 : f32
    %112 = arith.select %108, %107, %111 : f32
    %113 = arith.addf %76, %112 : f32
    %c4_i32_43 = arith.constant 4 : i32
    %114 = arith.muli %arg0, %c4_i32_43 : i32
    %c3_i32 = arith.constant 3 : i32
    %115 = arith.addi %114, %c3_i32 : i32
    %c24 = arith.constant 24 : index
    %c0_44 = arith.constant 0 : index
    %116 = vector.load %arg2[%c24, %c0_44] : memref<32x128xf32, #tpu.memory_space<vmem>>, vector<8x128xf32>
    %cst_45 = arith.constant 1.000000e+01 : f32
    %117 = vector.broadcast %cst_45 : f32 to vector<8x128xf32>
    %118 = arith.mulf %116, %117 : vector<8x128xf32>
    %cst_46 = arith.constant dense<0xFF800000> : vector<8xf32>
    %119 = vector.multi_reduction <maximumf>, %118, %cst_46 [1] : vector<8x128xf32> to vector<8xf32>
    %120 = vector.shape_cast %119 : vector<8xf32> to vector<8x1xf32>
    %121 = vector.broadcast %120 : vector<8x1xf32> to vector<8x128xf32>
    %122 = arith.subf %118, %121 : vector<8x128xf32>
    %123 = math.exp %122 : vector<8x128xf32>
    %cst_47 = arith.constant dense<0.000000e+00> : vector<8xf32>
    %124 = vector.multi_reduction <add>, %123, %cst_47 [1] : vector<8x128xf32> to vector<8xf32>
    %125 = vector.shape_cast %124 : vector<8xf32> to vector<8x1xf32>
    %126 = math.log %125 : vector<8x1xf32>
    %127 = vector.shape_cast %126 : vector<8x1xf32> to vector<1x8x1xf32>
    %cst_48 = arith.constant dense<0.000000e+00> : vector<1xf32>
    %128 = vector.multi_reduction <add>, %127, %cst_48 [1, 2] : vector<1x8x1xf32> to vector<1xf32>
    %129 = vector.shape_cast %128 : vector<1xf32> to vector<1x1x1xf32>
    %130 = vector.extract %129[0, 0, 0] : f32 from vector<1x1x1xf32>
    %c0_49 = arith.constant 0 : index
    %c0_50 = arith.constant 0 : index
    %131 = vector.load %arg7[%c0_49, %c0_50] : memref<8x128xf32, #tpu.memory_space<vmem>>, vector<8x128xf32>
    %132 = arith.mulf %131, %122 : vector<8x128xf32>
    %133 = vector.shape_cast %132 : vector<8x128xf32> to vector<1x8x128xf32>
    %cst_51 = arith.constant dense<0.000000e+00> : vector<1xf32>
    %134 = vector.multi_reduction <add>, %133, %cst_51 [1, 2] : vector<1x8x128xf32> to vector<1xf32>
    %135 = vector.shape_cast %134 : vector<1xf32> to vector<1x1x1xf32>
    %136 = vector.extract %135[0, 0, 0] : f32 from vector<1x1x1xf32>
    %137 = arith.subf %130, %136 : f32
    %c0_52 = arith.constant 0 : index
    %c0_53 = arith.constant 0 : index
    %138 = vector.load %arg8[%c0_52, %c0_53] : memref<8x128xf32, #tpu.memory_space<vmem>>, vector<8x128xf32>
    %139 = arith.mulf %138, %122 : vector<8x128xf32>
    %140 = vector.shape_cast %139 : vector<8x128xf32> to vector<1x8x128xf32>
    %cst_54 = arith.constant dense<0.000000e+00> : vector<1xf32>
    %141 = vector.multi_reduction <add>, %140, %cst_54 [1, 2] : vector<1x8x128xf32> to vector<1xf32>
    %142 = vector.shape_cast %141 : vector<1xf32> to vector<1x1x1xf32>
    %143 = vector.extract %142[0, 0, 0] : f32 from vector<1x1x1xf32>
    %144 = arith.subf %130, %143 : f32
    %c0_i32_55 = arith.constant 0 : i32
    %145 = arith.cmpi eq, %115, %c0_i32_55 : i32
    %c1_i32_56 = arith.constant 1 : i32
    %146 = arith.cmpi eq, %115, %c1_i32_56 : i32
    %147 = arith.addf %137, %144 : f32
    %148 = arith.select %146, %137, %147 : f32
    %149 = arith.select %145, %144, %148 : f32
    %150 = arith.addf %113, %149 : f32
    %c0_57 = arith.constant 0 : index
    %c0_58 = arith.constant 0 : index
    %151 = memref.load %arg9[%c0_57, %c0_58] : memref<1x1xf32, #tpu.memory_space<smem>>
    %152 = arith.addf %151, %150 : f32
    %c0_59 = arith.constant 0 : index
    %c0_60 = arith.constant 0 : index
    %153 = memref.load %arg9[%c0_59, %c0_60] : memref<1x1xf32, #tpu.memory_space<smem>>
    memref.store %152, %arg9[%c0_59, %c0_60] : memref<1x1xf32, #tpu.memory_space<smem>>
    %c0_i32_61 = arith.constant 0 : i32
    %154 = arith.cmpi eq, %arg0, %c0_i32_61 : i32
    %155 = arith.extui %154 : i1 to i32
    %c0_i32_62 = arith.constant 0 : i32
    %156 = arith.cmpi ne, %155, %c0_i32_62 : i32
    scf.if %156 {
      %c0_63 = arith.constant 0 : index
      %c0_64 = arith.constant 0 : index
      %157 = memref.load %arg9[%c0_63, %c0_64] : memref<1x1xf32, #tpu.memory_space<smem>>
      %cst_65 = arith.constant 0.020833334 : f32
      %158 = arith.mulf %157, %cst_65 : f32
      %c0_66 = arith.constant 0 : index
      %c0_67 = arith.constant 0 : index
      %159 = memref.load %arg5[%c0_66, %c0_67] : memref<1x1xf32, #tpu.memory_space<smem>>
      memref.store %158, %arg5[%c0_66, %c0_67] : memref<1x1xf32, #tpu.memory_space<smem>>
    } else {
    }
    return
  }
  func.func @transform_0(%arg0: i32, %arg1: memref<1xf32, #tpu.memory_space<smem>>) -> (i32, i32) {
    %c0_i32 = arith.constant 0 : i32
    %c0_i32_0 = arith.constant 0 : i32
    return %arg0, %c0_i32 : i32, i32
  }
  func.func @transform_1(%arg0: i32, %arg1: memref<1xf32, #tpu.memory_space<smem>>) -> (i32, i32) {
    %c0_i32 = arith.constant 0 : i32
    %c0_i32_0 = arith.constant 0 : i32
    %c0_i32_1 = arith.constant 0 : i32
    return %c0_i32, %c0_i32_0 : i32, i32
  }
  func.func @transform_2(%arg0: i32, %arg1: memref<1xf32, #tpu.memory_space<smem>>) -> (i32, i32) {
    %c0_i32 = arith.constant 0 : i32
    %c0_i32_0 = arith.constant 0 : i32
    %c0_i32_1 = arith.constant 0 : i32
    return %c0_i32, %c0_i32_0 : i32, i32
  }
  func.func @transform_3(%arg0: i32, %arg1: memref<1xf32, #tpu.memory_space<smem>>) -> (i32, i32) {
    %c0_i32 = arith.constant 0 : i32
    %c0_i32_0 = arith.constant 0 : i32
    %c0_i32_1 = arith.constant 0 : i32
    return %c0_i32, %c0_i32_0 : i32, i32
  }
  func.func @transform_4(%arg0: i32, %arg1: memref<1xf32, #tpu.memory_space<smem>>) -> (i32, i32) {
    %c0_i32 = arith.constant 0 : i32
    %c0_i32_0 = arith.constant 0 : i32
    %c0_i32_1 = arith.constant 0 : i32
    return %c0_i32, %c0_i32_0 : i32, i32
  }
}

</mosaic_0001>

<llo_original>
// kernel: tpu_custom_call.1
$region0: #{tpu_custom_call.1}
  #allocation0 [shape = 'u32[]', space=smem, size = 0x4, offset = 0x4, fixed_abs, tag = 'smem constant byte address 0x4 - core index']
  #allocation1 [shape = 'u32[72,128]{1,0:T(1,128)}', space=vmem, size = 0x9000, scoped, tag = 'internal scratch']
  #allocation2 [shape = 'f32[8,128]{1,0:T(8,128)}', space=vmem, size = 0x1000, scoped, tag = 'scratch operand']
  #allocation3 [shape = 'f32[8,128]{1,0:T(8,128)}', space=vmem, size = 0x1000, scoped, tag = 'scratch operand']
  #allocation4 [shape = 'f32[1,1]{1,0:T(1,128)}', space=smem, size = 0x200, scoped, tag = 'scratch operand']
  #allocation5 [shape = 's32[1]{0}', space=sflag, size = 0x4, scoped, tag = 'scoped memory for tpu_custom_call.1']
  #allocation6 [shape = 'f32[1]{0:T(128)S(6)}', space=smem, size = 0x200, scoped, tag = 'prefetched SMEM operand 0']
  %s0 = inlined_call_operand.<no memory space> [shape: f32[1], index: 0, kind: input, shape index: {}]
  %s1 = inlined_call_operand.hbm [shape: f32[32,128], index: 1, kind: input, shape index: {}]
  %s2 = inlined_call_operand.hbm [shape: f32[16,128], index: 2, kind: input, shape index: {}]
  %s3 = inlined_call_operand.vmem [shape: f32[1,128], index: 3, kind: input, shape index: {}]
  %s4 = inlined_call_operand.hbm [shape: f32[1,1], index: 4, kind: output, shape index: {0}]
  %s5 = inlined_call_operand.hbm [shape: f32[1,128], index: 5, kind: output, shape index: {1}]
  %6 = xla_tuple %s4, %s5
  %s7 = sld [smem:[#allocation0]]
  $region46: #{tpu_custom_call.1} parent=0
    _
  %s9 = ssub.s32 1, %s7
  %s10 = scalar_select 0, %s9, %s7
  %11 = sst [smem:[#allocation6]] %s0
  $region1: #{tpu_custom_call.1} parent=0
    #allocation7 [shape = 'u8[16384]{0}', space=vmem, size = 0x4000, scoped, tag = 'input window, operand 1, single buffered']
    #allocation8 [shape = 's32[1]{0}', space=sflag, size = 0x4, scoped, tag = 'scoped memory for tpu_custom_call.1']
    #allocation9 [shape = 's32[1]{0}', space=sflag, size = 0x4, scoped, tag = 'scoped memory for tpu_custom_call.1']
    #allocation10 [shape = 's32[1]{0}', space=sflag, size = 0x4, scoped, tag = 'scoped memory for tpu_custom_call.1']
    #allocation11 [shape = 'u8[8192]{0}', space=vmem, size = 0x2000, scoped, tag = 'input window, operand 2, single buffered']
    #allocation12 [shape = 's32[1]{0}', space=sflag, size = 0x4, scoped, tag = 'scoped memory for tpu_custom_call.1']
    #allocation13 [shape = 'u8[512]{0}', space=smem, size = 0x200, scoped, tag = 'output window, operand 0, single buffered']
    #allocation14 [shape = 'u8[512]{0}', space=vmem, size = 0x400, scoped, tag = 'output window, operand 1, single buffered']
    %12 = vsyncpa [#allocation8], 0
    %13 = vsyncpa [#allocation12], 0
    %14 = vsyncpa [#allocation10], 0
    %15 = vsyncpa [#allocation9], 0
    // Predicated region
    $region2: #{tpu_custom_call.1} parent=1 // pred_check
      _
    $region3: #{tpu_custom_call.1} parent=1 // pred_check_branch
      %17 = sbr.rel (0) target = $region5
    $region4: #{tpu_custom_call.1} parent=1 // pred_region
      %19 = vsyncadd [#allocation8], 0
      %s20 = sshll.u32 %s1, 4
      %s21 = int_to_ptr.hbm [resolvable:$true] %s20
      %s22 = sshll.u32 [#allocation7], 4
      %s23 = int_to_ptr.vmem [resolvable:$true] %s22
      %28 = dma.hbm_to_vmem [thread:$0]  %s21, 512, %s23, [#allocation8], 128, 128, 8
    $region5: #{tpu_custom_call.1} parent=1 // pred_fallthru
      _
    // Predicated region
    $region6: #{tpu_custom_call.1} parent=1 // pred_check
      _
    $region7: #{tpu_custom_call.1} parent=1 // pred_check_branch
      %30 = sbr.rel (0) target = $region9
    $region8: #{tpu_custom_call.1} parent=1 // pred_region
      %32 = vsyncadd [#allocation12], 0
      %s33 = sshll.u32 %s2, 4
      %s34 = int_to_ptr.hbm [resolvable:$true] %s33
      %s35 = sshll.u32 [#allocation11], 4
      %s36 = int_to_ptr.vmem [resolvable:$true] %s35
      %41 = dma.hbm_to_vmem [thread:$0]  %s34, 256, %s36, [#allocation12], 128, 128, 8
    $region9: #{tpu_custom_call.1} parent=1 // pred_fallthru
      _
    // Predicated region
    $region10: #{tpu_custom_call.1} parent=1 // pred_check
      _
    $region11: #{tpu_custom_call.1} parent=1 // pred_check_branch
      %43 = sbr.rel (0) target = $region13
    $region12: #{tpu_custom_call.1} parent=1 // pred_region
      _
    $region13: #{tpu_custom_call.1} parent=1 // pred_fallthru
      _
    // Predicated region
    $region14: #{tpu_custom_call.1} parent=1 // pred_check
      _
    $region15: #{tpu_custom_call.1} parent=1 // pred_check_branch
      %45 = sbr.rel (0) target = $region17
    $region16: #{tpu_custom_call.1} parent=1 // pred_region
      %47 = dma.done [#allocation8], 512
    $region17: #{tpu_custom_call.1} parent=1 // pred_fallthru
      _
    // Predicated region
    $region18: #{tpu_custom_call.1} parent=1 // pred_check
      _
    $region19: #{tpu_custom_call.1} parent=1 // pred_check_branch
      %49 = sbr.rel (0) target = $region21
    $region20: #{tpu_custom_call.1} parent=1 // pred_region
      %51 = dma.done [#allocation12], 256
    $region21: #{tpu_custom_call.1} parent=1 // pred_fallthru
      _
    %p52 = scmp.eq.s32.totalorder 0, 0
    // Predicated region
    $region22: #{tpu_custom_call.1} parent=1 // pred_check
      %p53 = pneg %p52
    $region23: #{tpu_custom_call.1} parent=1 // pred_check_branch
      %55 = sbr.rel (%p53) target = $region25
    $region24: #{tpu_custom_call.1} parent=1 // pred_region
      %v56 = vld [vmem:[#allocation11] sm:$0xff]
      %v57 = vld [vmem:[#allocation11 + $0x8] sm:$0xff]
      %v58 = vld [vmem:[%s3] sm:$0x1]
      %v60 = vperm.slane %v58, 0
      %v62 = vsub.f32 %v56, %v60
      %v63 = vsub.f32 %v57, %v60
      %s64 = sld [smem:[#allocation6]]
      %v65 = vstv %s64
      %v66 = vmul.f32 %v62, %v65
      %v67 = vmul.f32 %v63, %v65
      %68 = vmax.xlane.f32.xlu0 %v66
      %v69 = vpop.xlane.xlu0 %68
      %70 = vmax.xlane.f32.xlu0 %v67
      %v71 = vpop.xlane.xlu0 %70
      %v72 = vsub.f32 %v66, %v69
      %v73 = vsub.f32 %v67, %v71
      %v74 = vmul.f32 %v72, 1.442695
      %v75 = vpow.pop %v74
      %v76 = vmul.f32 %v73, 1.442695
      %v77 = vpow.pop %v76
      %78 = vadd.xlane.f32.xlu0 %v75
      %v79 = vpop.xlane.xlu0 %78
      %80 = vadd.xlane.f32.xlu0 %v77
      %v81 = vpop.xlane.xlu0 %80
      %v82 = vrcp.pop %v79
      %v83 = vmul.f32 %v79, %v82
      %v84 = vsub.f32 1.0, %v83
      %v85 = vmul.f32 %v82, %v84
      %v86 = vadd.f32 %v82, %v85
      %vm87 = vweird.f32 %v79
      %vm88 = vweird.f32 %v82
      %vm89 = vmor %vm87, %vm88
      %v90 = vsel %vm89, %v82, %v86
      %v91 = vand.u32 2147483647, %v79
      %vm92 = vcmp.eq.f32.partialorder %v91, 8.507059e+37
      %v93 = vand.u32 %v79, 2147483648
      %v94 = vor.u32 1.1754944e-38, %v93
      %v95 = vsel %vm92, %v94, %v90
      %v96 = vrcp.pop %v81
      %v97 = vmul.f32 %v81, %v96
      %v98 = vsub.f32 1.0, %v97
      %v99 = vmul.f32 %v96, %v98
      %v100 = vadd.f32 %v96, %v99
      %vm101 = vweird.f32 %v81
      %vm102 = vweird.f32 %v96
      %vm103 = vmor %vm101, %vm102
      %v104 = vsel %vm103, %v96, %v100
      %v105 = vand.u32 2147483647, %v81
      %vm106 = vcmp.eq.f32.partialorder %v105, 8.507059e+37
      %v107 = vand.u32 %v81, 2147483648
      %v108 = vor.u32 1.1754944e-38, %v107
      %v109 = vsel %vm106, %v108, %v104
      %v110 = vmul.f32 %v75, %v95
      %v111 = vmul.f32 %v77, %v109
      %112 = vst [vmem:[#allocation2] sm:$0xff] %v110
      %113 = vst [vmem:[#allocation3] sm:$0xff] %v111
      %vm114 = vcmask 130048
      %v116 = vsel %vm114, 1.0, 0
      %118 = vmatpush.msra.mxu0 0.0
      %119 = vmatpush.msra.mxu0 0.0
      %120 = vmatpush.msra.mxu0 0.0
      %121 = vmatpush.msra.mxu0 0.0
      %122 = vmatpush.msra.mxu0 0.0
      %123 = vmatpush.msra.mxu0 0.0
      %124 = vmatpush.msra.mxu0 0.0
      %125 = vmatpush.msra.mxu0 0.0
      %126 = vmatpush.msra.mxu0 0.0
      %127 = vmatpush.msra.mxu0 0.0
      %128 = vmatpush.msra.mxu0 0.0
      %129 = vmatpush.msra.mxu0 0.0
      %130 = vmatpush.msra.mxu0 0.0
      %131 = vmatpush.msra.mxu0 0.0
      %v132 = vand.u32 %v57, 4294901760
      %133 = vmatpush.msra.mxu0 %v132
      %v134 = vand.u32 %v56, 4294901760
      %135 = vmatpush.msra.mxu0 %v134
      %v136 = vand.u32 %v116, 4294901760
      %v137 = vsub.f32 %v116, %v136
      %v138 = vand.u32 %v137, 4294901760
      %v139 = vsub.f32 %v137, %v138
      %v140 = vand.u32 %v139, 4294901760
      %141 = vmatmul.f32.gmra.mxu0 %v140
      %v142 = vpop.f32.mrf.mxu0
      %v143 = vadd.f32 0.0, %v142
      %144 = vdwg.mxu0
      %145 = vmatpush.msra.mxu0 0.0
      %146 = vmatpush.msra.mxu0 0.0
      %147 = vmatpush.msra.mxu0 0.0
      %148 = vmatpush.msra.mxu0 0.0
      %149 = vmatpush.msra.mxu0 0.0
      %150 = vmatpush.msra.mxu0 0.0
      %151 = vmatpush.msra.mxu0 0.0
      %152 = vmatpush.msra.mxu0 0.0
      %153 = vmatpush.msra.mxu0 0.0
      %154 = vmatpush.msra.mxu0 0.0
      %155 = vmatpush.msra.mxu0 0.0
      %156 = vmatpush.msra.mxu0 0.0
      %157 = vmatpush.msra.mxu0 0.0
      %158 = vmatpush.msra.mxu0 0.0
      %v159 = vand.u32 %v57, 4294901760
      %v160 = vsub.f32 %v57, %v159
      %v161 = vand.u32 %v160, 4294901760
      %v162 = vsub.f32 %v160, %v161
      %v163 = vand.u32 %v162, 4294901760
      %164 = vmatpush.msra.mxu0 %v163
      %v165 = vand.u32 %v56, 4294901760
      %v166 = vsub.f32 %v56, %v165
      %v167 = vand.u32 %v166, 4294901760
      %v168 = vsub.f32 %v166, %v167
      %v169 = vand.u32 %v168, 4294901760
      %170 = vmatpush.msra.mxu0 %v169
      %v171 = vand.u32 %v116, 4294901760
      %172 = vmatmul.f32.gmra.mxu0 %v171
      %v173 = vpop.f32.mrf.mxu0
      %v174 = vadd.f32 %v143, %v173
      %175 = vdwg.mxu0
      %176 = vmatpush.msra.mxu0 0.0
      %177 = vmatpush.msra.mxu0 0.0
      %178 = vmatpush.msra.mxu0 0.0
      %179 = vmatpush.msra.mxu0 0.0
      %180 = vmatpush.msra.mxu0 0.0
      %181 = vmatpush.msra.mxu0 0.0
      %182 = vmatpush.msra.mxu0 0.0
      %183 = vmatpush.msra.mxu0 0.0
      %184 = vmatpush.msra.mxu0 0.0
      %185 = vmatpush.msra.mxu0 0.0
      %186 = vmatpush.msra.mxu0 0.0
      %187 = vmatpush.msra.mxu0 0.0
      %188 = vmatpush.msra.mxu0 0.0
      %189 = vmatpush.msra.mxu0 0.0
      %v190 = vand.u32 %v57, 4294901760
      %v191 = vsub.f32 %v57, %v190
      %192 = vmatpush.msra.mxu0 %v191
      %v193 = vand.u32 %v56, 4294901760
      %v194 = vsub.f32 %v56, %v193
      %195 = vmatpush.msra.mxu0 %v194
      %v196 = vand.u32 %v116, 4294901760
      %v197 = vsub.f32 %v116, %v196
      %198 = vmatmul.f32.gmra.mxu0 %v197
      %v199 = vpop.f32.mrf.mxu0
      %v200 = vadd.f32 %v174, %v199
      %201 = vdwg.mxu0
      %202 = vmatpush.msra.mxu0 0.0
      %203 = vmatpush.msra.mxu0 0.0
      %204 = vmatpush.msra.mxu0 0.0
      %205 = vmatpush.msra.mxu0 0.0
      %206 = vmatpush.msra.mxu0 0.0
      %207 = vmatpush.msra.mxu0 0.0
      %208 = vmatpush.msra.mxu0 0.0
      %209 = vmatpush.msra.mxu0 0.0
      %210 = vmatpush.msra.mxu0 0.0
      %211 = vmatpush.msra.mxu0 0.0
      %212 = vmatpush.msra.mxu0 0.0
      %213 = vmatpush.msra.mxu0 0.0
      %214 = vmatpush.msra.mxu0 0.0
      %215 = vmatpush.msra.mxu0 0.0
      %v216 = vand.u32 %v57, 4294901760
      %217 = vmatpush.msra.mxu0 %v216
      %v218 = vand.u32 %v56, 4294901760
      %219 = vmatpush.msra.mxu0 %v218
      %v220 = vand.u32 %v116, 4294901760
      %v221 = vsub.f32 %v116, %v220
      %v222 = vand.u32 %v221, 4294901760
      %223 = vmatmul.f32.gmra.mxu0 %v222
      %v224 = vpop.f32.mrf.mxu0
      %v225 = vadd.f32 %v200, %v224
      %226 = vdwg.mxu0
      %227 = vmatpush.msra.mxu0 0.0
      %228 = vmatpush.msra.mxu0 0.0
      %229 = vmatpush.msra.mxu0 0.0
      %230 = vmatpush.msra.mxu0 0.0
      %231 = vmatpush.msra.mxu0 0.0
      %232 = vmatpush.msra.mxu0 0.0
      %233 = vmatpush.msra.mxu0 0.0
      %234 = vmatpush.msra.mxu0 0.0
      %235 = vmatpush.msra.mxu0 0.0
      %236 = vmatpush.msra.mxu0 0.0
      %237 = vmatpush.msra.mxu0 0.0
      %238 = vmatpush.msra.mxu0 0.0
      %239 = vmatpush.msra.mxu0 0.0
      %240 = vmatpush.msra.mxu0 0.0
      %v241 = vand.u32 %v57, 4294901760
      %v242 = vsub.f32 %v57, %v241
      %v243 = vand.u32 %v242, 4294901760
      %244 = vmatpush.msra.mxu0 %v243
      %v245 = vand.u32 %v56, 4294901760
      %v246 = vsub.f32 %v56, %v245
      %v247 = vand.u32 %v246, 4294901760
      %248 = vmatpush.msra.mxu0 %v247
      %v249 = vand.u32 %v116, 4294901760
      %250 = vmatmul.f32.gmra.mxu0 %v249
      %v251 = vpop.f32.mrf.mxu0
      %v252 = vadd.f32 %v225, %v251
      %253 = vdwg.mxu0
      %254 = vmatpush.msra.mxu0 0.0
      %255 = vmatpush.msra.mxu0 0.0
      %256 = vmatpush.msra.mxu0 0.0
      %257 = vmatpush.msra.mxu0 0.0
      %258 = vmatpush.msra.mxu0 0.0
      %259 = vmatpush.msra.mxu0 0.0
      %260 = vmatpush.msra.mxu0 0.0
      %261 = vmatpush.msra.mxu0 0.0
      %262 = vmatpush.msra.mxu0 0.0
      %263 = vmatpush.msra.mxu0 0.0
      %264 = vmatpush.msra.mxu0 0.0
      %265 = vmatpush.msra.mxu0 0.0
      %266 = vmatpush.msra.mxu0 0.0
      %267 = vmatpush.msra.mxu0 0.0
      %v268 = vand.u32 %v57, 4294901760
      %269 = vmatpush.msra.mxu0 %v268
      %v270 = vand.u32 %v56, 4294901760
      %271 = vmatpush.msra.mxu0 %v270
      %v272 = vand.u32 %v116, 4294901760
      %273 = vmatmul.f32.gmra.mxu0 %v272
      %v274 = vpop.f32.mrf.mxu0
      %v275 = vadd.f32 %v252, %v274
      %276 = vdwg.mxu0
      %v277 = vld [vmem:[%s3] sm:$0x1]
      %v278 = vmul.f32 %v277, 0.9
      %v279 = vmul.f32 %v275, 0.00625
      %v280 = vadd.f32 %v278, %v279
      %281 = vst [vmem:[#allocation14] sm:$0x1] %v280
      %s282 = scalar_lea.smem [#allocation4], 0
      %283 = sst [smem:[%s282]] 0.0
    $region25: #{tpu_custom_call.1} parent=1 // pred_fallthru
      _
    %s284 = smul.u32 0, 4
    %v285 = vld [vmem:[#allocation7] sm:$0xff]
    %v286 = vmul.f32 %v285, 10.0
    %287 = vmax.xlane.f32.xlu0 %v286
    %v288 = vpop.xlane.xlu0 %287
    %v289 = vsub.f32 %v286, %v288
    %v290 = vmul.f32 %v289, 1.442695
    %v291 = vpow.pop %v290
    %292 = vadd.xlane.f32.xlu0 %v291
    %v293 = vpop.xlane.xlu0 %292
    %v294 = vlog2.pop %v293
    %v295 = vmul.f32 %v294, 0.6931472
    %vm296 = vcmask 7168
    %v297 = vsel %vm296, %v295, 0.0
    %298 = vadd.xlane.f32.xlu0 %v297
    %v299 = vpop.xlane.xlu0 %298
    %v300 = vrot.slane %v299, 4
    %v301 = vadd.f32 %v299, %v300
    %v302 = vrot.slane %v301, 2
    %v303 = vadd.f32 %v301, %v302
    %v304 = vrot.slane %v303, 1
    %v305 = vadd.f32 %v303, %v304
    %s306 = vtos %v305
    %v307 = vld [vmem:[#allocation2] sm:$0xff]
    %v308 = vmul.f32 %v307, %v289
    %309 = vadd.xlane.f32.xlu0 %v308
    %v310 = vpop.xlane.xlu0 %309
    %v311 = vrot.slane %v310, 4
    %v312 = vadd.f32 %v310, %v311
    %v313 = vrot.slane %v312, 2
    %v314 = vadd.f32 %v312, %v313
    %v315 = vrot.slane %v314, 1
    %v316 = vadd.f32 %v314, %v315
    %s317 = vtos %v316
    %s318 = ssub.f32 %s306, %s317
    %v319 = vld [vmem:[#allocation3] sm:$0xff]
    %v320 = vmul.f32 %v319, %v289
    %321 = vadd.xlane.f32.xlu0 %v320
    %v322 = vpop.xlane.xlu0 %321
    %v323 = vrot.slane %v322, 4
    %v324 = vadd.f32 %v322, %v323
    %v325 = vrot.slane %v324, 2
    %v326 = vadd.f32 %v324, %v325
    %v327 = vrot.slane %v326, 1
    %v328 = vadd.f32 %v326, %v327
    %s329 = vtos %v328
    %s330 = ssub.f32 %s306, %s329
    %p331 = scmp.eq.s32.totalorder %s284, 0
    %p332 = scmp.eq.s32.totalorder %s284, 1
    %s333 = sadd.f32 %s318, %s330
    %s334 = scalar_select %p332, %s318, %s333
    %s335 = scalar_select %p331, %s330, %s334
    %s336 = sadd.f32 %s335, 0.0
    %s337 = sadd.s32 %s284, 1
    %v338 = vld [vmem:[#allocation7 + $0x8] sm:$0xff]
    %v339 = vmul.f32 %v338, 10.0
    %340 = vmax.xlane.f32.xlu0 %v339
    %v341 = vpop.xlane.xlu0 %340
    %v342 = vsub.f32 %v339, %v341
    %v343 = vmul.f32 %v342, 1.442695
    %v344 = vpow.pop %v343
    %345 = vadd.xlane.f32.xlu0 %v344
    %v346 = vpop.xlane.xlu0 %345
    %v347 = vlog2.pop %v346
    %v348 = vmul.f32 %v347, 0.6931472
    %v349 = vsel %vm296, %v348, 0.0
    %350 = vadd.xlane.f32.xlu0 %v349
    %v351 = vpop.xlane.xlu0 %350
    %v352 = vrot.slane %v351, 4
    %v353 = vadd.f32 %v351, %v352
    %v354 = vrot.slane %v353, 2
    %v355 = vadd.f32 %v353, %v354
    %v356 = vrot.slane %v355, 1
    %v357 = vadd.f32 %v355, %v356
    %s358 = vtos %v357
    %v359 = vmul.f32 %v307, %v342
    %360 = vadd.xlane.f32.xlu0 %v359
    %v361 = vpop.xlane.xlu0 %360
    %v362 = vrot.slane %v361, 4
    %v363 = vadd.f32 %v361, %v362
    %v364 = vrot.slane %v363, 2
    %v365 = vadd.f32 %v363, %v364
    %v366 = vrot.slane %v365, 1
    %v367 = vadd.f32 %v365, %v366
    %s368 = vtos %v367
    %s369 = ssub.f32 %s358, %s368
    %v370 = vmul.f32 %v319, %v342
    %371 = vadd.xlane.f32.xlu0 %v370
    %v372 = vpop.xlane.xlu0 %371
    %v373 = vrot.slane %v372, 4
    %v374 = vadd.f32 %v372, %v373
    %v375 = vrot.slane %v374, 2
    %v376 = vadd.f32 %v374, %v375
    %v377 = vrot.slane %v376, 1
    %v378 = vadd.f32 %v376, %v377
    %s379 = vtos %v378
    %s380 = ssub.f32 %s358, %s379
    %p381 = scmp.eq.s32.totalorder %s337, 0
    %p382 = scmp.eq.s32.totalorder %s337, 1
    %s383 = sadd.f32 %s369, %s380
    %s384 = scalar_select %p382, %s369, %s383
    %s385 = scalar_select %p381, %s380, %s384
    %s386 = sadd.f32 %s336, %s385
    %s387 = sadd.s32 %s284, 2
    %v388 = vld [vmem:[#allocation7 + $0x10] sm:$0xff]
    %v389 = vmul.f32 %v388, 10.0
    %390 = vmax.xlane.f32.xlu0 %v389
    %v391 = vpop.xlane.xlu0 %390
    %v392 = vsub.f32 %v389, %v391
    %v393 = vmul.f32 %v392, 1.442695
    %v394 = vpow.pop %v393
    %395 = vadd.xlane.f32.xlu0 %v394
    %v396 = vpop.xlane.xlu0 %395
    %v397 = vlog2.pop %v396
    %v398 = vmul.f32 %v397, 0.6931472
    %v399 = vsel %vm296, %v398, 0.0
    %400 = vadd.xlane.f32.xlu0 %v399
    %v401 = vpop.xlane.xlu0 %400
    %v402 = vrot.slane %v401, 4
    %v403 = vadd.f32 %v401, %v402
    %v404 = vrot.slane %v403, 2
    %v405 = vadd.f32 %v403, %v404
    %v406 = vrot.slane %v405, 1
    %v407 = vadd.f32 %v405, %v406
    %s408 = vtos %v407
    %v409 = vmul.f32 %v307, %v392
    %410 = vadd.xlane.f32.xlu0 %v409
    %v411 = vpop.xlane.xlu0 %410
    %v412 = vrot.slane %v411, 4
    %v413 = vadd.f32 %v411, %v412
    %v414 = vrot.slane %v413, 2
    %v415 = vadd.f32 %v413, %v414
    %v416 = vrot.slane %v415, 1
    %v417 = vadd.f32 %v415, %v416
    %s418 = vtos %v417
    %s419 = ssub.f32 %s408, %s418
    %v420 = vmul.f32 %v319, %v392
    %421 = vadd.xlane.f32.xlu0 %v420
    %v422 = vpop.xlane.xlu0 %421
    %v423 = vrot.slane %v422, 4
    %v424 = vadd.f32 %v422, %v423
    %v425 = vrot.slane %v424, 2
    %v426 = vadd.f32 %v424, %v425
    %v427 = vrot.slane %v426, 1
    %v428 = vadd.f32 %v426, %v427
    %s429 = vtos %v428
    %s430 = ssub.f32 %s408, %s429
    %p431 = scmp.eq.s32.totalorder %s387, 0
    %p432 = scmp.eq.s32.totalorder %s387, 1
    %s433 = sadd.f32 %s419, %s430
    %s434 = scalar_select %p432, %s419, %s433
    %s435 = scalar_select %p431, %s430, %s434
    %s436 = sadd.f32 %s386, %s435
    %s437 = sadd.s32 %s284, 3
    %v438 = vld [vmem:[#allocation7 + $0x18] sm:$0xff]
    %v439 = vmul.f32 %v438, 10.0
    %440 = vmax.xlane.f32.xlu0 %v439
    %v441 = vpop.xlane.xlu0 %440
    %v442 = vsub.f32 %v439, %v441
    %v443 = vmul.f32 %v442, 1.442695
    %v444 = vpow.pop %v443
    %445 = vadd.xlane.f32.xlu0 %v444
    %v446 = vpop.xlane.xlu0 %445
    %v447 = vlog2.pop %v446
    %v448 = vmul.f32 %v447, 0.6931472
    %v449 = vsel %vm296, %v448, 0.0
    %450 = vadd.xlane.f32.xlu0 %v449
    %v451 = vpop.xlane.xlu0 %450
    %v452 = vrot.slane %v451, 4
    %v453 = vadd.f32 %v451, %v452
    %v454 = vrot.slane %v453, 2
    %v455 = vadd.f32 %v453, %v454
    %v456 = vrot.slane %v455, 1
    %v457 = vadd.f32 %v455, %v456
    %s458 = vtos %v457
    %v459 = vmul.f32 %v307, %v442
    %460 = vadd.xlane.f32.xlu0 %v459
    %v461 = vpop.xlane.xlu0 %460
    %v462 = vrot.slane %v461, 4
    %v463 = vadd.f32 %v461, %v462
    %v464 = vrot.slane %v463, 2
    %v465 = vadd.f32 %v463, %v464
    %v466 = vrot.slane %v465, 1
    %v467 = vadd.f32 %v465, %v466
    %s468 = vtos %v467
    %s469 = ssub.f32 %s458, %s468
    %v470 = vmul.f32 %v319, %v442
    %471 = vadd.xlane.f32.xlu0 %v470
    %v472 = vpop.xlane.xlu0 %471
    %v473 = vrot.slane %v472, 4
    %v474 = vadd.f32 %v472, %v473
    %v475 = vrot.slane %v474, 2
    %v476 = vadd.f32 %v474, %v475
    %v477 = vrot.slane %v476, 1
    %v478 = vadd.f32 %v476, %v477
    %s479 = vtos %v478
    %s480 = ssub.f32 %s458, %s479
    %p481 = scmp.eq.s32.totalorder %s437, 0
    %p482 = scmp.eq.s32.totalorder %s437, 1
    %s483 = sadd.f32 %s469, %s480
    %s484 = scalar_select %p482, %s469, %s483
    %s485 = scalar_select %p481, %s480, %s484
    %s486 = sadd.f32 %s436, %s485
    %s487 = sld [smem:[#allocation4]]
    %s488 = sadd.f32 %s487, %s486
    %s489 = scalar_lea.smem [#allocation4], 0
    %490 = sst [smem:[%s489]] %s488
    // Predicated region
    $region26: #{tpu_custom_call.1} parent=1 // pred_check
      %p491 = pneg %p52
    $region27: #{tpu_custom_call.1} parent=1 // pred_check_branch
      %493 = sbr.rel (%p491) target = $region29
    $region28: #{tpu_custom_call.1} parent=1 // pred_region
      %s494 = sld [smem:[#allocation4]]
      %s495 = smul.f32 %s494, 0.020833334
      %s496 = scalar_lea.smem [#allocation13], 0
      %497 = sst [smem:[%s496]] %s495
    $region29: #{tpu_custom_call.1} parent=1 // pred_fallthru
      _
    // Predicated region
    $region30: #{tpu_custom_call.1} parent=1 // pred_check
      _
    $region31: #{tpu_custom_call.1} parent=1 // pred_check_branch
      %499 = sbr.rel (0) target = $region33
    $region32: #{tpu_custom_call.1} parent=1 // pred_region
      %501 = vsyncadd [#allocation10], 0
      %s503 = sshll.u32 %s4, 4
      %s504 = int_to_ptr.hbm [resolvable:$true] %s503
      %506 = dma.smem_to_hbm [#allocation13], 16, %s504, [#allocation10]
    $region33: #{tpu_custom_call.1} parent=1 // pred_fallthru
      _
    // Predicated region
    $region34: #{tpu_custom_call.1} parent=1 // pred_check
      _
    $region35: #{tpu_custom_call.1} parent=1 // pred_check_branch
      %508 = sbr.rel (0) target = $region37
    $region36: #{tpu_custom_call.1} parent=1 // pred_region
      %510 = vsyncadd [#allocation9], 0
      %s512 = sshll.u32 [#allocation14], 4
      %s513 = int_to_ptr.vmem [resolvable:$true] %s512
      %s514 = sshll.u32 %s5, 4
      %s515 = int_to_ptr.hbm [resolvable:$true] %s514
      %517 = dma.vmem_to_hbm [thread:$0]  %s513, 16, %s515, [#allocation9]
    $region37: #{tpu_custom_call.1} parent=1 // pred_fallthru
      _
    // Predicated region
    $region38: #{tpu_custom_call.1} parent=1 // pred_check
      _
    $region39: #{tpu_custom_call.1} parent=1 // pred_check_branch
      %519 = sbr.rel (0) target = $region41
    $region40: #{tpu_custom_call.1} parent=1 // pred_region
      %521 = dma.done [#allocation10], 16
    $region41: #{tpu_custom_call.1} parent=1 // pred_fallthru
      _
    // Predicated region
    $region42: #{tpu_custom_call.1} parent=1 // pred_check
      _
    $region43: #{tpu_custom_call.1} parent=1 // pred_check_branch
      %523 = sbr.rel (0) target = $region45
    $region44: #{tpu_custom_call.1} parent=1 // pred_region
      %525 = dma.done [#allocation9], 16
    $region45: #{tpu_custom_call.1} parent=1 // pred_fallthru
      _
    %526 = sfence
    %527 = vsyncpa [#allocation8], 1
    %528 = vsyncpa [#allocation12], 1
    %529 = vsyncpa [#allocation9], 1
    %530 = vsyncpa [#allocation10], 1

</llo_original>
